<compile_context>
chip_gen: v5e
topology: v5e:2x2
jax: 0.10.0
libtpu: 0.0.40
codegen_flags: <defaults>
</compile_context>

<pallas_src>
import functools

import jax
import jax.numpy as jnp
from jax.experimental import pallas as pl
from jax.experimental.pallas import tpu as pltpu

K_IN = 784      # 28 * 28
HID = 256
N_OUT = 10
N_PAD = 128     # lane-dense output slab for fc2


def _round_up(x, m):
    return ((x + m - 1) // m) * m


def mlp_kernel(x_ref, w1_ref, b1_ref, w2_ref, b2_ref, o_ref):
    # x_ref:  [TB, 784] f32       w1_ref: [784, 256] bf16   b1_ref: [1, 256] f32
    # w2_ref: [256, 128] bf16     b2_ref: [1, 128]   f32    o_ref:  [TB, 128] f32
    x = x_ref[...].astype(jnp.bfloat16)                      # VPU cast, hidden under MXU
    h = jnp.dot(x, w1_ref[...], preferred_element_type=jnp.float32)
    h = jnp.maximum(h + b1_ref[...], 0.0)                    # bias + ReLU in f32
    out = jnp.dot(h.astype(jnp.bfloat16), w2_ref[...],
                  preferred_element_type=jnp.float32)
    o_ref[...] = (out + b2_ref[...]).astype(o_ref.dtype)


def prepare_params(w1, b1, w2, b2):
    """One-time param prep (do NOT call per forward): bf16 weights, fc2 N pad.

    w1: [784, 256], b1: [256], w2: [256, 10], b2: [10] (weights pre-transposed
    to (in_features, out_features) so the kernel computes x @ W + b).
    """
    w1_p = w1.astype(jnp.bfloat16)                                     # [784, 256]
    b1_p = b1.reshape(1, HID).astype(jnp.float32)                      # [1, 256]
    w2_p = jnp.pad(w2.astype(jnp.float32),
                   ((0, 0), (0, N_PAD - N_OUT))).astype(jnp.bfloat16)  # [256, 128]
    b2_p = jnp.pad(b2.reshape(1, N_OUT).astype(jnp.float32),
                   ((0, 0), (0, N_PAD - N_OUT)))                       # [1, 128]
    return w1_p, b1_p, w2_p, b2_p


@jax.jit
def mnist_nn_forward(x_nchw, w1_p, b1_p, w2_p, b2_p):
    """x_nchw: [B, 1, 28, 28] float32. Returns logits [B, 10] float32."""
    B = x_nchw.shape[0]
    x_flat = x_nchw.reshape(B, K_IN)  # == torch x.view(B, -1); stays f32

    # Batch tile: 16-aligned (bf16 sublane packing), capped at 1024, and for
    # large B chosen so the grid has >=4 steps (v7x: both TCs fed; v5e/v6e:
    # still well under default scoped-VMEM with f32 x tiles).
    TB = min(1024, max(16, _round_up(pl.cdiv(B, 4), 16)))
    B_pad = _round_up(B, TB)
    if B_pad != B:
        x_flat = jnp.pad(x_flat, ((0, B_pad - B), (0, 0)))
    grid = (B_pad // TB,)

    flops = 2 * B_pad * (K_IN * HID + HID * N_PAD)
    bytes_accessed = (B_pad * K_IN * 4 + w1_p.size * 2 + w2_p.size * 2
                      + b1_p.size * 4 + b2_p.size * 4 + B_pad * N_PAD * 4)

    out = pl.pallas_call(
        mlp_kernel,
        out_shape=jax.ShapeDtypeStruct((B_pad, N_PAD), jnp.float32),
        grid=grid,
        in_specs=[
            pl.BlockSpec((TB, K_IN), lambda i: (i, 0)),    # x streamed (784 = full dim)
            pl.BlockSpec((K_IN, HID), lambda i: (0, 0)),   # w1 resident in VMEM
            pl.BlockSpec((1, HID), lambda i: (0, 0)),      # b1 resident
            pl.BlockSpec((HID, N_PAD), lambda i: (0, 0)),  # w2 resident
            pl.BlockSpec((1, N_PAD), lambda i: (0, 0)),    # b2 resident
        ],
        out_specs=pl.BlockSpec((TB, N_PAD), lambda i: (i, 0)),
        compiler_params=pltpu.CompilerParams(
            dimension_semantics=("parallel",)),
        cost_estimate=pl.CostEstimate(
            flops=flops, transcendentals=0, bytes_accessed=bytes_accessed),
    )(x_flat, w1_p, b1_p, w2_p, b2_p)

    # Padded batch rows (= relu(b1) @ w2 + b2) and padded logit columns are
    # discarded here; under jit this slice fuses with downstream consumers.
    return out[:B, :N_OUT]


def init_params(key):
    """Deterministic init matching the nn.Linear shapes (stored transposed)."""
    k1, k2, k3, k4 = jax.random.split(key, 4)
    bound1 = 1.0 / jnp.sqrt(784.0)
    bound2 = 1.0 / jnp.sqrt(256.0)
    w1 = jax.random.uniform(k1, (784, 256), jnp.float32, -bound1, bound1)
    b1 = jax.random.uniform(k2, (256,), jnp.float32, -bound1, bound1)
    w2 = jax.random.uniform(k3, (256, 10), jnp.float32, -bound2, bound2)
    b2 = jax.random.uniform(k4, (10,), jnp.float32, -bound2, bound2)
    return w1, b1, w2, b2


if __name__ == "__main__":
    key = jax.random.PRNGKey(0)
    kx, kp = jax.random.split(key)
    B = 2
    x = jax.random.normal(kx, (B, 1, 28, 28), jnp.float32)  # MNIST-shaped input
    w1, b1, w2, b2 = init_params(kp)
    params = prepare_params(w1, b1, w2, b2)   # one-time prep, outside the hot path

    logits = mnist_nn_forward(x, *params)
    jax.block_until_ready(logits)

    # Pure-JAX reference with the same bf16 operand rounding / f32 accumulation.
    hp = jax.lax.Precision.HIGHEST
    x_flat = x.reshape(B, -1)
    xb = x_flat.astype(jnp.bfloat16).astype(jnp.float32)
    w1b = w1.astype(jnp.bfloat16).astype(jnp.float32)
    w2b = w2.astype(jnp.bfloat16).astype(jnp.float32)
    h_ref = jnp.maximum(jnp.dot(xb, w1b, precision=hp) + b1, 0.0)
    ref = jnp.dot(h_ref.astype(jnp.bfloat16).astype(jnp.float32), w2b,
                  precision=hp) + b2

    assert logits.shape == (B, 10)
    assert jnp.allclose(logits, ref, atol=1e-2, rtol=1e-2), (
        jnp.max(jnp.abs(logits - ref)))

    print("KERNEL_OK")
</pallas_src>

<mosaic_0001>
module attributes {stable_mosaic.version = 11 : i64} {
  func.func @mlp_kernel(%arg0: i32, %arg1: memref<16x784xf32, #tpu.memory_space<vmem>>, %arg2: memref<784x256xbf16, #tpu.memory_space<vmem>>, %arg3: memref<1x256xf32, #tpu.memory_space<vmem>>, %arg4: memref<256x128xbf16, #tpu.memory_space<vmem>>, %arg5: memref<1x128xf32, #tpu.memory_space<vmem>>, %arg6: memref<16x128xf32, #tpu.memory_space<vmem>>) attributes {dimension_semantics = [#tpu.dimension_semantics<parallel>], iteration_bounds = array<i64: 1>, scalar_prefetch = 0 : i64, scratch_operands = 0 : i64, tpu.core_type = #tpu.core_type<tc>, window_params = [{transform_indices = @transform_0, window_bounds = array<i64: 16, 784>}, {pipeline_mode = #tpu.pipeline_mode<synchronous>, transform_indices = @transform_1, window_bounds = array<i64: 784, 256>}, {pipeline_mode = #tpu.pipeline_mode<synchronous>, transform_indices = @transform_2, window_bounds = array<i64: 1, 256>}, {pipeline_mode = #tpu.pipeline_mode<synchronous>, transform_indices = @transform_3, window_bounds = array<i64: 256, 128>}, {pipeline_mode = #tpu.pipeline_mode<synchronous>, transform_indices = @transform_4, window_bounds = array<i64: 1, 128>}, {transform_indices = @transform_5, window_bounds = array<i64: 16, 128>}]} {
    %c0 = arith.constant 0 : index
    %c0_0 = arith.constant 0 : index
    %0 = vector.load %arg1[%c0, %c0_0] : memref<16x784xf32, #tpu.memory_space<vmem>>, vector<16x784xf32>
    %1 = arith.truncf %0 : vector<16x784xf32> to vector<16x784xbf16>
    %c0_1 = arith.constant 0 : index
    %c0_2 = arith.constant 0 : index
    %2 = vector.load %arg2[%c0_1, %c0_2] : memref<784x256xbf16, #tpu.memory_space<vmem>>, vector<784x256xbf16>
    %cst = arith.constant dense<0.000000e+00> : vector<16x256xf32>
    %3 = tpu.matmul %1, %2, %cst {dimension_numbers = #tpu.dot_dimension_numbers<[1], [0], [0], [1], [0, 0, 1, 1], [], []>} : vector<16x784xbf16>, vector<784x256xbf16>, vector<16x256xf32> -> vector<16x256xf32>
    %c0_3 = arith.constant 0 : index
    %c0_4 = arith.constant 0 : index
    %4 = vector.load %arg3[%c0_3, %c0_4] : memref<1x256xf32, #tpu.memory_space<vmem>>, vector<1x256xf32>
    %5 = vector.broadcast %4 : vector<1x256xf32> to vector<16x256xf32>
    %6 = arith.addf %3, %5 : vector<16x256xf32>
    %cst_5 = arith.constant 0.000000e+00 : f32
    %7 = vector.broadcast %cst_5 : f32 to vector<16x256xf32>
    %8 = arith.maximumf %6, %7 : vector<16x256xf32>
    %9 = arith.truncf %8 : vector<16x256xf32> to vector<16x256xbf16>
    %c0_6 = arith.constant 0 : index
    %c0_7 = arith.constant 0 : index
    %10 = vector.load %arg4[%c0_6, %c0_7] : memref<256x128xbf16, #tpu.memory_space<vmem>>, vector<256x128xbf16>
    %cst_8 = arith.constant dense<0.000000e+00> : vector<16x128xf32>
    %11 = tpu.matmul %9, %10, %cst_8 {dimension_numbers = #tpu.dot_dimension_numbers<[1], [0], [0], [1], [0, 0, 1, 1], [], []>} : vector<16x256xbf16>, vector<256x128xbf16>, vector<16x128xf32> -> vector<16x128xf32>
    %c0_9 = arith.constant 0 : index
    %c0_10 = arith.constant 0 : index
    %12 = vector.load %arg5[%c0_9, %c0_10] : memref<1x128xf32, #tpu.memory_space<vmem>>, vector<1x128xf32>
    %13 = vector.broadcast %12 : vector<1x128xf32> to vector<16x128xf32>
    %14 = arith.addf %11, %13 : vector<16x128xf32>
    %c0_11 = arith.constant 0 : index
    %c0_12 = arith.constant 0 : index
    %15 = vector.load %arg6[%c0_11, %c0_12] : memref<16x128xf32, #tpu.memory_space<vmem>>, vector<16x128xf32>
    tpu.vector_store %arg6[%c0_11, %c0_12], %14 {strides = array<i32>} : memref<16x128xf32, #tpu.memory_space<vmem>>, vector<16x128xf32>,
    return
  }
  func.func @transform_0(%arg0: i32) -> (i32, i32) {
    %c0_i32 = arith.constant 0 : i32
    %c0_i32_0 = arith.constant 0 : i32
    return %arg0, %c0_i32 : i32, i32
  }
  func.func @transform_1(%arg0: i32) -> (i32, i32) {
    %c0_i32 = arith.constant 0 : i32
    %c0_i32_0 = arith.constant 0 : i32
    %c0_i32_1 = arith.constant 0 : i32
    return %c0_i32, %c0_i32_0 : i32, i32
  }
  func.func @transform_2(%arg0: i32) -> (i32, i32) {
    %c0_i32 = arith.constant 0 : i32
    %c0_i32_0 = arith.constant 0 : i32
    %c0_i32_1 = arith.constant 0 : i32
    return %c0_i32, %c0_i32_0 : i32, i32
  }
  func.func @transform_3(%arg0: i32) -> (i32, i32) {
    %c0_i32 = arith.constant 0 : i32
    %c0_i32_0 = arith.constant 0 : i32
    %c0_i32_1 = arith.constant 0 : i32
    return %c0_i32, %c0_i32_0 : i32, i32
  }
  func.func @transform_4(%arg0: i32) -> (i32, i32) {
    %c0_i32 = arith.constant 0 : i32
    %c0_i32_0 = arith.constant 0 : i32
    %c0_i32_1 = arith.constant 0 : i32
    return %c0_i32, %c0_i32_0 : i32, i32
  }
  func.func @transform_5(%arg0: i32) -> (i32, i32) {
    %c0_i32 = arith.constant 0 : i32
    %c0_i32_0 = arith.constant 0 : i32
    return %arg0, %c0_i32 : i32, i32
  }
}

</mosaic_0001>

<llo_original>
// kernel: mnist_nn_forward.1
$region0: #{mnist_nn_forward.1}
  #allocation0 [shape = 'u32[]', space=smem, size = 0x4, offset = 0x4, fixed_abs, tag = 'smem constant byte address 0x4 - core index']
  #allocation1 [shape = 'u32[72,128]{1,0:T(1,128)}', space=vmem, size = 0x9000, scoped, tag = 'internal scratch']
  %s0 = inlined_call_operand.vmem [shape: f32[16,784], index: 0, kind: input, shape index: {}]
  %s1 = inlined_call_operand.hbm [shape: bf16[784,256], index: 1, kind: input, shape index: {}]
  %s2 = inlined_call_operand.vmem [shape: f32[1,256], index: 2, kind: input, shape index: {}]
  %s3 = inlined_call_operand.vmem [shape: bf16[256,128], index: 3, kind: input, shape index: {}]
  %s4 = inlined_call_operand.vmem [shape: f32[1,128], index: 4, kind: input, shape index: {}]
  %s5 = inlined_call_operand.vmem [shape: f32[16,128], index: 5, kind: output, shape index: {}]
  %s6 = sld [smem:[#allocation0]]
  $region34: #{mnist_nn_forward.1} parent=0
    _
  %s8 = ssub.s32 1, %s6
  %s9 = scalar_select 0, %s8, %s6
  $region1: #{mnist_nn_forward.1} parent=0
    #allocation2 [shape = 'u8[401408]{0}', space=vmem, size = 0x62000, scoped, tag = 'input window, operand 1, single buffered']
    #allocation3 [shape = 's32[1]{0}', space=sflag, size = 0x4, scoped, tag = 'scoped memory for mnist_nn_forward.1']
    %10 = vsyncpa [#allocation3], 0
    // Predicated region
    $region2: #{mnist_nn_forward.1} parent=1 // pred_check
      _
    $region3: #{mnist_nn_forward.1} parent=1 // pred_check_branch
      %12 = sbr.rel (0) target = $region5
    $region4: #{mnist_nn_forward.1} parent=1 // pred_region
      _
    $region5: #{mnist_nn_forward.1} parent=1 // pred_fallthru
      _
    // Predicated region
    $region6: #{mnist_nn_forward.1} parent=1 // pred_check
      _
    $region7: #{mnist_nn_forward.1} parent=1 // pred_check_branch
      %14 = sbr.rel (0) target = $region9
    $region8: #{mnist_nn_forward.1} parent=1 // pred_region
      %16 = vsyncadd [#allocation3], 0
      %s17 = sshll.u32 %s1, 4
      %s18 = int_to_ptr.hbm [resolvable:$true] %s17
      %s19 = sshll.u32 [#allocation2], 4
      %s20 = int_to_ptr.vmem [resolvable:$true] %s19
      %25 = dma.hbm_to_vmem [thread:$0]  %s18, 12544, %s20, [#allocation3], 128, 128, 8
    $region9: #{mnist_nn_forward.1} parent=1 // pred_fallthru
      _
    // Predicated region
    $region10: #{mnist_nn_forward.1} parent=1 // pred_check
      _
    $region11: #{mnist_nn_forward.1} parent=1 // pred_check_branch
      %27 = sbr.rel (0) target = $region13
    $region12: #{mnist_nn_forward.1} parent=1 // pred_region
      _
    $region13: #{mnist_nn_forward.1} parent=1 // pred_fallthru
      _
    // Predicated region
    $region14: #{mnist_nn_forward.1} parent=1 // pred_check
      _
    $region15: #{mnist_nn_forward.1} parent=1 // pred_check_branch
      %29 = sbr.rel (0) target = $region17
    $region16: #{mnist_nn_forward.1} parent=1 // pred_region
      _
    $region17: #{mnist_nn_forward.1} parent=1 // pred_fallthru
      _
    // Predicated region
    $region18: #{mnist_nn_forward.1} parent=1 // pred_check
      _
    $region19: #{mnist_nn_forward.1} parent=1 // pred_check_branch
      %31 = sbr.rel (0) target = $region21
    $region20: #{mnist_nn_forward.1} parent=1 // pred_region
      _
    $region21: #{mnist_nn_forward.1} parent=1 // pred_fallthru
      _
    // Predicated region
    $region22: #{mnist_nn_forward.1} parent=1 // pred_check
      _
    $region23: #{mnist_nn_forward.1} parent=1 // pred_check_branch
      %33 = sbr.rel (0) target = $region25
    $region24: #{mnist_nn_forward.1} parent=1 // pred_region
      %35 = dma.done [#allocation3], 12544
    $region25: #{mnist_nn_forward.1} parent=1 // pred_fallthru
      _
    %v37 = vld [vmem:[%s0] sm:$0xff]
    %v38 = vld [vmem:[%s0 + $0x8] sm:$0xff]
    %v39 = vld [vmem:[%s0 + $0x10] sm:$0xff]
    %v40 = vld [vmem:[%s0 + $0x18] sm:$0xff]
    %v41 = vld [vmem:[%s0 + $0x20] sm:$0xff]
    %v42 = vld [vmem:[%s0 + $0x28] sm:$0xff]
    %v43 = vld [vmem:[%s0 + $0x30] sm:$0xff]
    %v44 = vld [vmem:[%s0 + $0x38] sm:$0xff]
    %v45 = vld [vmem:[%s0 + $0x40] sm:$0xff]
    %v46 = vld [vmem:[%s0 + $0x48] sm:$0xff]
    %v47 = vld [vmem:[%s0 + $0x50] sm:$0xff]
    %v48 = vld [vmem:[%s0 + $0x58] sm:$0xff]
    %v49 = vld [vmem:[%s0 + $0x60] sm:$0xff]
    %v50 = vld [vmem:[%s0 + $0x68] sm:$0xff]
    %v51 = vpack.c.bf16 %v44, %v37
    %v52 = vpack.c.bf16 %v45, %v38
    %v53 = vpack.c.bf16 %v46, %v39
    %v54 = vpack.c.bf16 %v47, %v40
    %v55 = vpack.c.bf16 %v48, %v41
    %v56 = vpack.c.bf16 %v49, %v42
    %v57 = vpack.c.bf16 %v50, %v43
    %v58 = vld [vmem:[#allocation2] sm:$0xff]
    %v59 = vld [vmem:[#allocation2 + $0x8] sm:$0xff]
    %v60 = vld [vmem:[#allocation2 + $0x10] sm:$0xff]
    %v61 = vld [vmem:[#allocation2 + $0x18] sm:$0xff]
    %v62 = vld [vmem:[#allocation2 + $0x20] sm:$0xff]
    %v63 = vld [vmem:[#allocation2 + $0x28] sm:$0xff]
    %v64 = vld [vmem:[#allocation2 + $0x30] sm:$0xff]
    %v65 = vld [vmem:[#allocation2 + $0x38] sm:$0xff]
    %v66 = vld [vmem:[#allocation2 + $0x40] sm:$0xff]
    %v67 = vld [vmem:[#allocation2 + $0x48] sm:$0xff]
    %v68 = vld [vmem:[#allocation2 + $0x50] sm:$0xff]
    %v69 = vld [vmem:[#allocation2 + $0x58] sm:$0xff]
    %v70 = vld [vmem:[#allocation2 + $0x60] sm:$0xff]
    %v71 = vld [vmem:[#allocation2 + $0x68] sm:$0xff]
    %v72 = vld [vmem:[#allocation2 + $0x70] sm:$0xff]
    %v73 = vld [vmem:[#allocation2 + $0x78] sm:$0xff]
    %v74 = vld [vmem:[#allocation2 + $0x80] sm:$0xff]
    %v75 = vld [vmem:[#allocation2 + $0x88] sm:$0xff]
    %v76 = vld [vmem:[#allocation2 + $0x90] sm:$0xff]
    %v77 = vld [vmem:[#allocation2 + $0x98] sm:$0xff]
    %v78 = vld [vmem:[#allocation2 + $0xa0] sm:$0xff]
    %v79 = vld [vmem:[#allocation2 + $0xa8] sm:$0xff]
    %v80 = vld [vmem:[#allocation2 + $0xb0] sm:$0xff]
    %v81 = vld [vmem:[#allocation2 + $0xb8] sm:$0xff]
    %v82 = vld [vmem:[#allocation2 + $0xc0] sm:$0xff]
    %v83 = vld [vmem:[#allocation2 + $0xc8] sm:$0xff]
    %v84 = vld [vmem:[#allocation2 + $0xd0] sm:$0xff]
    %v85 = vld [vmem:[#allocation2 + $0xd8] sm:$0xff]
    %v86 = vld [vmem:[#allocation2 + $0xe0] sm:$0xff]
    %v87 = vld [vmem:[#allocation2 + $0xe8] sm:$0xff]
    %v88 = vld [vmem:[#allocation2 + $0xf0] sm:$0xff]
    %v89 = vld [vmem:[#allocation2 + $0xf8] sm:$0xff]
    %v90 = vld [vmem:[#allocation2 + $0x100] sm:$0xff]
    %v91 = vld [vmem:[#allocation2 + $0x108] sm:$0xff]
    %v92 = vld [vmem:[#allocation2 + $0x110] sm:$0xff]
    %v93 = vld [vmem:[#allocation2 + $0x118] sm:$0xff]
    %v94 = vld [vmem:[#allocation2 + $0x120] sm:$0xff]
    %v95 = vld [vmem:[#allocation2 + $0x128] sm:$0xff]
    %v96 = vld [vmem:[#allocation2 + $0x130] sm:$0xff]
    %v97 = vld [vmem:[#allocation2 + $0x138] sm:$0xff]
    %v98 = vld [vmem:[#allocation2 + $0x140] sm:$0xff]
    %v99 = vld [vmem:[#allocation2 + $0x148] sm:$0xff]
    %v100 = vld [vmem:[#allocation2 + $0x150] sm:$0xff]
    %v101 = vld [vmem:[#allocation2 + $0x158] sm:$0xff]
    %v102 = vld [vmem:[#allocation2 + $0x160] sm:$0xff]
    %v103 = vld [vmem:[#allocation2 + $0x168] sm:$0xff]
    %v104 = vld [vmem:[#allocation2 + $0x170] sm:$0xff]
    %v105 = vld [vmem:[#allocation2 + $0x178] sm:$0xff]
    %v106 = vld [vmem:[#allocation2 + $0x180] sm:$0xff]
    %v107 = vld [vmem:[#allocation2 + $0x188] sm:$0xff]
    %v108 = vld [vmem:[#allocation2 + $0x190] sm:$0xff]
    %v109 = vld [vmem:[#allocation2 + $0x198] sm:$0xff]
    %v110 = vld [vmem:[#allocation2 + $0x1a0] sm:$0xff]
    %v111 = vld [vmem:[#allocation2 + $0x1a8] sm:$0xff]
    %v112 = vld [vmem:[#allocation2 + $0x1b0] sm:$0xff]
    %v113 = vld [vmem:[#allocation2 + $0x1b8] sm:$0xff]
    %v114 = vld [vmem:[#allocation2 + $0x1c0] sm:$0xff]
    %v115 = vld [vmem:[#allocation2 + $0x1c8] sm:$0xff]
    %v116 = vld [vmem:[#allocation2 + $0x1d0] sm:$0xff]
    %v117 = vld [vmem:[#allocation2 + $0x1d8] sm:$0xff]
    %v118 = vld [vmem:[#allocation2 + $0x1e0] sm:$0xff]
    %v119 = vld [vmem:[#allocation2 + $0x1e8] sm:$0xff]
    %v120 = vld [vmem:[#allocation2 + $0x1f0] sm:$0xff]
    %v121 = vld [vmem:[#allocation2 + $0x1f8] sm:$0xff]
    %v122 = vld [vmem:[#allocation2 + $0x200] sm:$0xff]
    %v123 = vld [vmem:[#allocation2 + $0x208] sm:$0xff]
    %v124 = vld [vmem:[#allocation2 + $0x210] sm:$0xff]
    %v125 = vld [vmem:[#allocation2 + $0x218] sm:$0xff]
    %v126 = vld [vmem:[#allocation2 + $0x220] sm:$0xff]
    %v127 = vld [vmem:[#allocation2 + $0x228] sm:$0xff]
    %v128 = vld [vmem:[#allocation2 + $0x230] sm:$0xff]
    %v129 = vld [vmem:[#allocation2 + $0x238] sm:$0xff]
    %v130 = vld [vmem:[#allocation2 + $0x240] sm:$0xff]
    %v131 = vld [vmem:[#allocation2 + $0x248] sm:$0xff]
    %v132 = vld [vmem:[#allocation2 + $0x250] sm:$0xff]
    %v133 = vld [vmem:[#allocation2 + $0x258] sm:$0xff]
    %v134 = vld [vmem:[#allocation2 + $0x260] sm:$0xff]
    %v135 = vld [vmem:[#allocation2 + $0x268] sm:$0xff]
    %v136 = vld [vmem:[#allocation2 + $0x270] sm:$0xff]
    %v137 = vld [vmem:[#allocation2 + $0x278] sm:$0xff]
    %v138 = vld [vmem:[#allocation2 + $0x280] sm:$0xff]
    %v139 = vld [vmem:[#allocation2 + $0x288] sm:$0xff]
    %v140 = vld [vmem:[#allocation2 + $0x290] sm:$0xff]
    %v141 = vld [vmem:[#allocation2 + $0x298] sm:$0xff]
    %v142 = vld [vmem:[#allocation2 + $0x2a0] sm:$0xff]
    %v143 = vld [vmem:[#allocation2 + $0x2a8] sm:$0xff]
    %v144 = vld [vmem:[#allocation2 + $0x2b0] sm:$0xff]
    %v145 = vld [vmem:[#allocation2 + $0x2b8] sm:$0xff]
    %v146 = vld [vmem:[#allocation2 + $0x2c0] sm:$0xff]
    %v147 = vld [vmem:[#allocation2 + $0x2c8] sm:$0xff]
    %v148 = vld [vmem:[#allocation2 + $0x2d0] sm:$0xff]
    %v149 = vld [vmem:[#allocation2 + $0x2d8] sm:$0xff]
    %v150 = vld [vmem:[#allocation2 + $0x2e0] sm:$0xff]
    %v151 = vld [vmem:[#allocation2 + $0x2e8] sm:$0xff]
    %v152 = vld [vmem:[#allocation2 + $0x2f0] sm:$0xff]
    %v153 = vld [vmem:[#allocation2 + $0x2f8] sm:$0xff]
    %v154 = vld [vmem:[#allocation2 + $0x300] sm:$0xff]
    %v155 = vld [vmem:[#allocation2 + $0x308] sm:$0xff]
    %v156 = vld [vmem:[%s2] sm:$0x3]
    %v158 = vperm.slane %v156, 0
    %v159 = vperm.slane %v156, 1
    %v260 = vunpack.c.l.b16 %v58
    %v261 = vunpack.c.h.b16 %v58
    %v262 = vunpack.c.l.b16 %v59
    %v263 = vunpack.c.h.b16 %v59
    %v264 = vunpack.c.l.b16 %v60
    %v265 = vunpack.c.h.b16 %v60
    %v266 = vunpack.c.l.b16 %v61
    %v267 = vunpack.c.h.b16 %v61
    %v268 = vunpack.c.l.b16 %v62
    %v269 = vunpack.c.h.b16 %v62
    %v270 = vunpack.c.l.b16 %v63
    %v271 = vunpack.c.h.b16 %v63
    %v272 = vunpack.c.l.b16 %v64
    %v273 = vunpack.c.h.b16 %v64
    %v274 = vunpack.c.l.b16 %v65
    %v275 = vunpack.c.h.b16 %v65
    %v276 = vunpack.c.l.b16 %v66
    %v277 = vunpack.c.h.b16 %v66
    %v278 = vunpack.c.l.b16 %v67
    %v279 = vunpack.c.h.b16 %v67
    %v280 = vunpack.c.l.b16 %v68
    %v281 = vunpack.c.h.b16 %v68
    %v282 = vunpack.c.l.b16 %v69
    %v283 = vunpack.c.h.b16 %v69
    %v284 = vunpack.c.l.b16 %v70
    %v285 = vunpack.c.h.b16 %v70
    %v286 = vunpack.c.l.b16 %v71
    %v287 = vunpack.c.h.b16 %v71
    %v288 = vunpack.c.l.b16 %v72
    %v289 = vunpack.c.h.b16 %v72
    %v290 = vunpack.c.l.b16 %v73
    %v291 = vunpack.c.h.b16 %v73
    %v292 = vunpack.c.l.b16 %v74
    %v293 = vunpack.c.h.b16 %v74
    %v294 = vunpack.c.l.b16 %v75
    %v295 = vunpack.c.h.b16 %v75
    %v296 = vunpack.c.l.b16 %v76
    %v297 = vunpack.c.h.b16 %v76
    %v298 = vunpack.c.l.b16 %v77
    %v299 = vunpack.c.h.b16 %v77
    %v300 = vunpack.c.l.b16 %v78
    %v301 = vunpack.c.h.b16 %v78
    %v302 = vunpack.c.l.b16 %v79
    %v303 = vunpack.c.h.b16 %v79
    %v304 = vunpack.c.l.b16 %v80
    %v305 = vunpack.c.h.b16 %v80
    %v306 = vunpack.c.l.b16 %v81
    %v307 = vunpack.c.h.b16 %v81
    %v308 = vunpack.c.l.b16 %v82
    %v309 = vunpack.c.h.b16 %v82
    %v310 = vunpack.c.l.b16 %v83
    %v311 = vunpack.c.h.b16 %v83
    %v312 = vunpack.c.l.b16 %v84
    %v313 = vunpack.c.h.b16 %v84
    %v314 = vunpack.c.l.b16 %v85
    %v315 = vunpack.c.h.b16 %v85
    %v316 = vunpack.c.l.b16 %v86
    %v317 = vunpack.c.h.b16 %v86
    %v318 = vunpack.c.l.b16 %v87
    %v319 = vunpack.c.h.b16 %v87
    %v320 = vunpack.c.l.b16 %v88
    %v321 = vunpack.c.h.b16 %v88
    %v322 = vunpack.c.l.b16 %v89
    %v323 = vunpack.c.h.b16 %v89
    %v324 = vunpack.c.l.b16 %v90
    %v325 = vunpack.c.h.b16 %v90
    %v326 = vunpack.c.l.b16 %v91
    %v327 = vunpack.c.h.b16 %v91
    %v328 = vunpack.c.l.b16 %v92
    %v329 = vunpack.c.h.b16 %v92
    %v330 = vunpack.c.l.b16 %v93
    %v331 = vunpack.c.h.b16 %v93
    %v332 = vunpack.c.l.b16 %v94
    %v333 = vunpack.c.h.b16 %v94
    %v334 = vunpack.c.l.b16 %v95
    %v335 = vunpack.c.h.b16 %v95
    %v336 = vunpack.c.l.b16 %v96
    %v337 = vunpack.c.h.b16 %v96
    %v338 = vunpack.c.l.b16 %v97
    %v339 = vunpack.c.h.b16 %v97
    %v340 = vunpack.c.l.b16 %v98
    %v341 = vunpack.c.h.b16 %v98
    %v342 = vunpack.c.l.b16 %v99
    %v343 = vunpack.c.h.b16 %v99
    %v344 = vunpack.c.l.b16 %v100
    %v345 = vunpack.c.h.b16 %v100
    %v346 = vunpack.c.l.b16 %v101
    %v347 = vunpack.c.h.b16 %v101
    %v348 = vunpack.c.l.b16 %v102
    %v349 = vunpack.c.h.b16 %v102
    %v350 = vunpack.c.l.b16 %v103
    %v351 = vunpack.c.h.b16 %v103
    %v352 = vunpack.c.l.b16 %v104
    %v353 = vunpack.c.h.b16 %v104
    %v354 = vunpack.c.l.b16 %v105
    %v355 = vunpack.c.h.b16 %v105
    %v356 = vunpack.c.l.b16 %v106
    %v357 = vunpack.c.h.b16 %v106
    %v358 = vunpack.c.l.b16 %v107
    %v359 = vunpack.c.h.b16 %v107
    %v360 = vunpack.c.l.b16 %v108
    %v361 = vunpack.c.h.b16 %v108
    %v362 = vunpack.c.l.b16 %v109
    %v363 = vunpack.c.h.b16 %v109
    %v364 = vunpack.c.l.b16 %v110
    %v365 = vunpack.c.h.b16 %v110
    %v366 = vunpack.c.l.b16 %v111
    %v367 = vunpack.c.h.b16 %v111
    %v368 = vunpack.c.l.b16 %v112
    %v369 = vunpack.c.h.b16 %v112
    %v370 = vunpack.c.l.b16 %v113
    %v371 = vunpack.c.h.b16 %v113
    %v372 = vunpack.c.l.b16 %v114
    %v373 = vunpack.c.h.b16 %v114
    %v374 = vunpack.c.l.b16 %v115
    %v375 = vunpack.c.h.b16 %v115
    %v376 = vunpack.c.l.b16 %v116
    %v377 = vunpack.c.h.b16 %v116
    %v378 = vunpack.c.l.b16 %v117
    %v379 = vunpack.c.h.b16 %v117
    %v380 = vunpack.c.l.b16 %v118
    %v381 = vunpack.c.h.b16 %v118
    %v382 = vunpack.c.l.b16 %v119
    %v383 = vunpack.c.h.b16 %v119
    %v384 = vunpack.c.l.b16 %v120
    %v385 = vunpack.c.h.b16 %v120
    %v386 = vunpack.c.l.b16 %v121
    %v387 = vunpack.c.h.b16 %v121
    %v388 = vunpack.c.l.b16 %v122
    %v389 = vunpack.c.h.b16 %v122
    %v390 = vunpack.c.l.b16 %v123
    %v391 = vunpack.c.h.b16 %v123
    %v392 = vunpack.c.l.b16 %v124
    %v393 = vunpack.c.h.b16 %v124
    %v394 = vunpack.c.l.b16 %v125
    %v395 = vunpack.c.h.b16 %v125
    %v396 = vunpack.c.l.b16 %v126
    %v397 = vunpack.c.h.b16 %v126
    %v398 = vunpack.c.l.b16 %v127
    %v399 = vunpack.c.h.b16 %v127
    %v400 = vunpack.c.l.b16 %v128
    %v401 = vunpack.c.h.b16 %v128
    %v402 = vunpack.c.l.b16 %v129
    %v403 = vunpack.c.h.b16 %v129
    %v404 = vunpack.c.l.b16 %v130
    %v405 = vunpack.c.h.b16 %v130
    %v406 = vunpack.c.l.b16 %v131
    %v407 = vunpack.c.h.b16 %v131
    %v408 = vunpack.c.l.b16 %v132
    %v409 = vunpack.c.h.b16 %v132
    %v410 = vunpack.c.l.b16 %v133
    %v411 = vunpack.c.h.b16 %v133
    %v412 = vunpack.c.l.b16 %v134
    %v413 = vunpack.c.h.b16 %v134
    %v414 = vunpack.c.l.b16 %v135
    %v415 = vunpack.c.h.b16 %v135
    %v416 = vunpack.c.l.b16 %v136
    %v417 = vunpack.c.h.b16 %v136
    %v418 = vunpack.c.l.b16 %v137
    %v419 = vunpack.c.h.b16 %v137
    %v420 = vunpack.c.l.b16 %v138
    %v421 = vunpack.c.h.b16 %v138
    %v422 = vunpack.c.l.b16 %v139
    %v423 = vunpack.c.h.b16 %v139
    %v424 = vunpack.c.l.b16 %v140
    %v425 = vunpack.c.h.b16 %v140
    %v426 = vunpack.c.l.b16 %v141
    %v427 = vunpack.c.h.b16 %v141
    %v428 = vunpack.c.l.b16 %v142
    %v429 = vunpack.c.h.b16 %v142
    %v430 = vunpack.c.l.b16 %v143
    %v431 = vunpack.c.h.b16 %v143
    %v432 = vunpack.c.l.b16 %v144
    %v433 = vunpack.c.h.b16 %v144
    %v434 = vunpack.c.l.b16 %v145
    %v435 = vunpack.c.h.b16 %v145
    %v436 = vunpack.c.l.b16 %v146
    %v437 = vunpack.c.h.b16 %v146
    %v438 = vunpack.c.l.b16 %v147
    %v439 = vunpack.c.h.b16 %v147
    %v440 = vunpack.c.l.b16 %v148
    %v441 = vunpack.c.h.b16 %v148
    %v442 = vunpack.c.l.b16 %v149
    %v443 = vunpack.c.h.b16 %v149
    %v444 = vunpack.c.l.b16 %v150
    %v445 = vunpack.c.h.b16 %v150
    %v446 = vunpack.c.l.b16 %v151
    %v447 = vunpack.c.h.b16 %v151
    %v448 = vunpack.c.l.b16 %v152
    %v449 = vunpack.c.h.b16 %v152
    %v450 = vunpack.c.l.b16 %v153
    %v451 = vunpack.c.h.b16 %v153
    %v452 = vunpack.c.l.b16 %v154
    %v453 = vunpack.c.h.b16 %v154
    %v454 = vunpack.c.l.b16 %v155
    %v455 = vunpack.c.h.b16 %v155
    %v456 = vpack.c.b16 %v262, %v260
    %v457 = vpack.c.b16 %v263, %v261
    %v458 = vpack.c.b16 %v266, %v264
    %v459 = vpack.c.b16 %v267, %v265
    %v460 = vpack.c.b16 %v270, %v268
    %v461 = vpack.c.b16 %v271, %v269
    %v462 = vpack.c.b16 %v274, %v272
    %v463 = vpack.c.b16 %v275, %v273
    %v464 = vpack.c.b16 %v278, %v276
    %v465 = vpack.c.b16 %v279, %v277
    %v466 = vpack.c.b16 %v282, %v280
    %v467 = vpack.c.b16 %v283, %v281
    %v468 = vpack.c.b16 %v286, %v284
    %v469 = vpack.c.b16 %v287, %v285
    %v470 = vpack.c.b16 %v290, %v288
    %v471 = vpack.c.b16 %v291, %v289
    %v472 = vpack.c.b16 %v294, %v292
    %v473 = vpack.c.b16 %v295, %v293
    %v474 = vpack.c.b16 %v298, %v296
    %v475 = vpack.c.b16 %v299, %v297
    %v476 = vpack.c.b16 %v302, %v300
    %v477 = vpack.c.b16 %v303, %v301
    %v478 = vpack.c.b16 %v306, %v304
    %v479 = vpack.c.b16 %v307, %v305
    %v480 = vpack.c.b16 %v310, %v308
    %v481 = vpack.c.b16 %v311, %v309
    %v482 = vpack.c.b16 %v314, %v312
    %v483 = vpack.c.b16 %v315, %v313
    %v484 = vpack.c.b16 %v318, %v316
    %v485 = vpack.c.b16 %v319, %v317
    %v486 = vpack.c.b16 %v322, %v320
    %v487 = vpack.c.b16 %v323, %v321
    %v488 = vpack.c.b16 %v326, %v324
    %v489 = vpack.c.b16 %v327, %v325
    %v490 = vpack.c.b16 %v330, %v328
    %v491 = vpack.c.b16 %v331, %v329
    %v492 = vpack.c.b16 %v334, %v332
    %v493 = vpack.c.b16 %v335, %v333
    %v494 = vpack.c.b16 %v338, %v336
    %v495 = vpack.c.b16 %v339, %v337
    %v496 = vpack.c.b16 %v342, %v340
    %v497 = vpack.c.b16 %v343, %v341
    %v498 = vpack.c.b16 %v346, %v344
    %v499 = vpack.c.b16 %v347, %v345
    %v500 = vpack.c.b16 %v350, %v348
    %v501 = vpack.c.b16 %v351, %v349
    %v502 = vpack.c.b16 %v354, %v352
    %v503 = vpack.c.b16 %v355, %v353
    %v504 = vpack.c.b16 %v358, %v356
    %v505 = vpack.c.b16 %v359, %v357
    %v506 = vpack.c.b16 %v362, %v360
    %v507 = vpack.c.b16 %v363, %v361
    %v508 = vpack.c.b16 %v366, %v364
    %v509 = vpack.c.b16 %v367, %v365
    %v510 = vpack.c.b16 %v370, %v368
    %v511 = vpack.c.b16 %v371, %v369
    %v512 = vpack.c.b16 %v374, %v372
    %v513 = vpack.c.b16 %v375, %v373
    %v514 = vpack.c.b16 %v378, %v376
    %v515 = vpack.c.b16 %v379, %v377
    %v516 = vpack.c.b16 %v382, %v380
    %v517 = vpack.c.b16 %v383, %v381
    %v518 = vpack.c.b16 %v386, %v384
    %v519 = vpack.c.b16 %v387, %v385
    %v520 = vpack.c.b16 %v390, %v388
    %v521 = vpack.c.b16 %v391, %v389
    %v522 = vpack.c.b16 %v394, %v392
    %v523 = vpack.c.b16 %v395, %v393
    %v524 = vpack.c.b16 %v398, %v396
    %v525 = vpack.c.b16 %v399, %v397
    %v526 = vpack.c.b16 %v402, %v400
    %v527 = vpack.c.b16 %v403, %v401
    %v528 = vpack.c.b16 %v406, %v404
    %v529 = vpack.c.b16 %v407, %v405
    %v530 = vpack.c.b16 %v410, %v408
    %v531 = vpack.c.b16 %v411, %v409
    %v532 = vpack.c.b16 %v414, %v412
    %v533 = vpack.c.b16 %v415, %v413
    %v534 = vpack.c.b16 %v418, %v416
    %v535 = vpack.c.b16 %v419, %v417
    %v536 = vpack.c.b16 %v422, %v420
    %v537 = vpack.c.b16 %v423, %v421
    %v538 = vpack.c.b16 %v426, %v424
    %v539 = vpack.c.b16 %v427, %v425
    %v540 = vpack.c.b16 %v430, %v428
    %v541 = vpack.c.b16 %v431, %v429
    %v542 = vpack.c.b16 %v434, %v432
    %v543 = vpack.c.b16 %v435, %v433
    %v544 = vpack.c.b16 %v438, %v436
    %v545 = vpack.c.b16 %v439, %v437
    %v546 = vpack.c.b16 %v442, %v440
    %v547 = vpack.c.b16 %v443, %v441
    %v548 = vpack.c.b16 %v446, %v444
    %v549 = vpack.c.b16 %v447, %v445
    %v550 = vpack.c.b16 %v450, %v448
    %v551 = vpack.c.b16 %v451, %v449
    %v552 = vpack.c.b16 %v454, %v452
    %v553 = vpack.c.b16 %v455, %v453
    %vm652 = vcmask 130048
    %v654 = vsel %vm652, %v57, 0
    %656 = vmatpush.bf16.msra.mxu0 %v470
    %657 = vmatpush.bf16.msra.mxu0 %v468
    %658 = vmatpush.bf16.msra.mxu0 %v466
    %659 = vmatpush.bf16.msra.mxu0 %v464
    %660 = vmatpush.bf16.msra.mxu0 %v462
    %661 = vmatpush.bf16.msra.mxu0 %v460
    %662 = vmatpush.bf16.msra.mxu0 %v458
    %663 = vmatpush.bf16.msra.mxu0 %v456
    %664 = vmatmul.bf16.gmra.mxu0 %v51
    %v665 = vpop.f32.mrf.mxu0
    %v666 = vadd.f32 %v158, %v665
    %v667 = vpop.f32.mrf.mxu0
    %v668 = vadd.f32 %v158, %v667
    %669 = vdwg.mxu0
    %670 = vmatpush.bf16.msra.mxu0 %v486
    %671 = vmatpush.bf16.msra.mxu0 %v484
    %672 = vmatpush.bf16.msra.mxu0 %v482
    %673 = vmatpush.bf16.msra.mxu0 %v480
    %674 = vmatpush.bf16.msra.mxu0 %v478
    %675 = vmatpush.bf16.msra.mxu0 %v476
    %676 = vmatpush.bf16.msra.mxu0 %v474
    %677 = vmatpush.bf16.msra.mxu0 %v472
    %678 = vmatmul.bf16.gmra.mxu0 %v52
    %v679 = vpop.f32.mrf.mxu0
    %v680 = vadd.f32 %v666, %v679
    %v681 = vpop.f32.mrf.mxu0
    %v682 = vadd.f32 %v668, %v681
    %683 = vdwg.mxu0
    %684 = vmatpush.bf16.msra.mxu0 %v502
    %685 = vmatpush.bf16.msra.mxu0 %v500
    %686 = vmatpush.bf16.msra.mxu0 %v498
    %687 = vmatpush.bf16.msra.mxu0 %v496
    %688 = vmatpush.bf16.msra.mxu0 %v494
    %689 = vmatpush.bf16.msra.mxu0 %v492
    %690 = vmatpush.bf16.msra.mxu0 %v490
    %691 = vmatpush.bf16.msra.mxu0 %v488
    %692 = vmatmul.bf16.gmra.mxu0 %v53
    %v693 = vpop.f32.mrf.mxu0
    %v694 = vadd.f32 %v680, %v693
    %v695 = vpop.f32.mrf.mxu0
    %v696 = vadd.f32 %v682, %v695
    %697 = vdwg.mxu0
    %698 = vmatpush.bf16.msra.mxu0 %v518
    %699 = vmatpush.bf16.msra.mxu0 %v516
    %700 = vmatpush.bf16.msra.mxu0 %v514
    %701 = vmatpush.bf16.msra.mxu0 %v512
    %702 = vmatpush.bf16.msra.mxu0 %v510
    %703 = vmatpush.bf16.msra.mxu0 %v508
    %704 = vmatpush.bf16.msra.mxu0 %v506
    %705 = vmatpush.bf16.msra.mxu0 %v504
    %706 = vmatmul.bf16.gmra.mxu0 %v54
    %v707 = vpop.f32.mrf.mxu0
    %v708 = vadd.f32 %v694, %v707
    %v709 = vpop.f32.mrf.mxu0
    %v710 = vadd.f32 %v696, %v709
    %711 = vdwg.mxu0
    %712 = vmatpush.bf16.msra.mxu0 %v534
    %713 = vmatpush.bf16.msra.mxu0 %v532
    %714 = vmatpush.bf16.msra.mxu0 %v530
    %715 = vmatpush.bf16.msra.mxu0 %v528
    %716 = vmatpush.bf16.msra.mxu0 %v526
    %717 = vmatpush.bf16.msra.mxu0 %v524
    %718 = vmatpush.bf16.msra.mxu0 %v522
    %719 = vmatpush.bf16.msra.mxu0 %v520
    %720 = vmatmul.bf16.gmra.mxu0 %v55
    %v721 = vpop.f32.mrf.mxu0
    %v722 = vadd.f32 %v708, %v721
    %v723 = vpop.f32.mrf.mxu0
    %v724 = vadd.f32 %v710, %v723
    %725 = vdwg.mxu0
    %726 = vmatpush.bf16.msra.mxu0 %v550
    %727 = vmatpush.bf16.msra.mxu0 %v548
    %728 = vmatpush.bf16.msra.mxu0 %v546
    %729 = vmatpush.bf16.msra.mxu0 %v544
    %730 = vmatpush.bf16.msra.mxu0 %v542
    %731 = vmatpush.bf16.msra.mxu0 %v540
    %732 = vmatpush.bf16.msra.mxu0 %v538
    %733 = vmatpush.bf16.msra.mxu0 %v536
    %734 = vmatmul.bf16.gmra.mxu0 %v56
    %v735 = vpop.f32.mrf.mxu0
    %v736 = vadd.f32 %v722, %v735
    %v737 = vpop.f32.mrf.mxu0
    %v738 = vadd.f32 %v724, %v737
    %739 = vdwg.mxu0
    %740 = vmatpush.bf16.msra.mxu0 0
    %741 = vmatpush.bf16.msra.mxu0 0
    %742 = vmatpush.bf16.msra.mxu0 0
    %743 = vmatpush.bf16.msra.mxu0 0
    %744 = vmatpush.bf16.msra.mxu0 0
    %745 = vmatpush.bf16.msra.mxu0 0
    %746 = vmatpush.bf16.msra.mxu0 0
    %747 = vmatpush.bf16.msra.mxu0 %v552
    %748 = vmatmul.bf16.gmra.mxu0 %v654
    %v749 = vpop.f32.mrf.mxu0
    %v750 = vadd.f32 %v736, %v749
    %v751 = vpop.f32.mrf.mxu0
    %v752 = vadd.f32 %v738, %v751
    %753 = vdwg.mxu0
    %754 = vmatpush.bf16.msra.mxu0 %v471
    %755 = vmatpush.bf16.msra.mxu0 %v469
    %756 = vmatpush.bf16.msra.mxu0 %v467
    %757 = vmatpush.bf16.msra.mxu0 %v465
    %758 = vmatpush.bf16.msra.mxu0 %v463
    %759 = vmatpush.bf16.msra.mxu0 %v461
    %760 = vmatpush.bf16.msra.mxu0 %v459
    %761 = vmatpush.bf16.msra.mxu0 %v457
    %762 = vmatmul.bf16.gmra.mxu0 %v51
    %v763 = vpop.f32.mrf.mxu0
    %v764 = vadd.f32 %v159, %v763
    %v765 = vpop.f32.mrf.mxu0
    %v766 = vadd.f32 %v159, %v765
    %767 = vdwg.mxu0
    %768 = vmatpush.bf16.msra.mxu0 %v487
    %769 = vmatpush.bf16.msra.mxu0 %v485
    %770 = vmatpush.bf16.msra.mxu0 %v483
    %771 = vmatpush.bf16.msra.mxu0 %v481
    %772 = vmatpush.bf16.msra.mxu0 %v479
    %773 = vmatpush.bf16.msra.mxu0 %v477
    %774 = vmatpush.bf16.msra.mxu0 %v475
    %775 = vmatpush.bf16.msra.mxu0 %v473
    %776 = vmatmul.bf16.gmra.mxu0 %v52
    %v777 = vpop.f32.mrf.mxu0
    %v778 = vadd.f32 %v764, %v777
    %v779 = vpop.f32.mrf.mxu0
    %v780 = vadd.f32 %v766, %v779
    %781 = vdwg.mxu0
    %782 = vmatpush.bf16.msra.mxu0 %v503
    %783 = vmatpush.bf16.msra.mxu0 %v501
    %784 = vmatpush.bf16.msra.mxu0 %v499
    %785 = vmatpush.bf16.msra.mxu0 %v497
    %786 = vmatpush.bf16.msra.mxu0 %v495
    %787 = vmatpush.bf16.msra.mxu0 %v493
    %788 = vmatpush.bf16.msra.mxu0 %v491
    %789 = vmatpush.bf16.msra.mxu0 %v489
    %790 = vmatmul.bf16.gmra.mxu0 %v53
    %v791 = vpop.f32.mrf.mxu0
    %v792 = vadd.f32 %v778, %v791
    %v793 = vpop.f32.mrf.mxu0
    %v794 = vadd.f32 %v780, %v793
    %795 = vdwg.mxu0
    %796 = vmatpush.bf16.msra.mxu0 %v519
    %797 = vmatpush.bf16.msra.mxu0 %v517
    %798 = vmatpush.bf16.msra.mxu0 %v515
    %799 = vmatpush.bf16.msra.mxu0 %v513
    %800 = vmatpush.bf16.msra.mxu0 %v511
    %801 = vmatpush.bf16.msra.mxu0 %v509
    %802 = vmatpush.bf16.msra.mxu0 %v507
    %803 = vmatpush.bf16.msra.mxu0 %v505
    %804 = vmatmul.bf16.gmra.mxu0 %v54
    %v805 = vpop.f32.mrf.mxu0
    %v806 = vadd.f32 %v792, %v805
    %v807 = vpop.f32.mrf.mxu0
    %v808 = vadd.f32 %v794, %v807
    %809 = vdwg.mxu0
    %810 = vmatpush.bf16.msra.mxu0 %v535
    %811 = vmatpush.bf16.msra.mxu0 %v533
    %812 = vmatpush.bf16.msra.mxu0 %v531
    %813 = vmatpush.bf16.msra.mxu0 %v529
    %814 = vmatpush.bf16.msra.mxu0 %v527
    %815 = vmatpush.bf16.msra.mxu0 %v525
    %816 = vmatpush.bf16.msra.mxu0 %v523
    %817 = vmatpush.bf16.msra.mxu0 %v521
    %818 = vmatmul.bf16.gmra.mxu0 %v55
    %v819 = vpop.f32.mrf.mxu0
    %v820 = vadd.f32 %v806, %v819
    %v821 = vpop.f32.mrf.mxu0
    %v822 = vadd.f32 %v808, %v821
    %823 = vdwg.mxu0
    %824 = vmatpush.bf16.msra.mxu0 %v551
    %825 = vmatpush.bf16.msra.mxu0 %v549
    %826 = vmatpush.bf16.msra.mxu0 %v547
    %827 = vmatpush.bf16.msra.mxu0 %v545
    %828 = vmatpush.bf16.msra.mxu0 %v543
    %829 = vmatpush.bf16.msra.mxu0 %v541
    %830 = vmatpush.bf16.msra.mxu0 %v539
    %831 = vmatpush.bf16.msra.mxu0 %v537
    %832 = vmatmul.bf16.gmra.mxu0 %v56
    %v833 = vpop.f32.mrf.mxu0
    %v834 = vadd.f32 %v820, %v833
    %v835 = vpop.f32.mrf.mxu0
    %v836 = vadd.f32 %v822, %v835
    %837 = vdwg.mxu0
    %838 = vmatpush.bf16.msra.mxu0 0
    %839 = vmatpush.bf16.msra.mxu0 0
    %840 = vmatpush.bf16.msra.mxu0 0
    %841 = vmatpush.bf16.msra.mxu0 0
    %842 = vmatpush.bf16.msra.mxu0 0
    %843 = vmatpush.bf16.msra.mxu0 0
    %844 = vmatpush.bf16.msra.mxu0 0
    %845 = vmatpush.bf16.msra.mxu0 %v553
    %846 = vmatmul.bf16.gmra.mxu0 %v654
    %v847 = vpop.f32.mrf.mxu0
    %v848 = vadd.f32 %v834, %v847
    %v849 = vpop.f32.mrf.mxu0
    %v850 = vadd.f32 %v836, %v849
    %851 = vdwg.mxu0
    %v852 = vmax.f32 %v750, 0.0
    %v853 = vmax.f32 %v848, 0.0
    %v854 = vmax.f32 %v752, 0.0
    %v855 = vmax.f32 %v850, 0.0
    %v856 = vpack.c.bf16 %v854, %v852
    %v857 = vpack.c.bf16 %v855, %v853
    %v858 = vld [vmem:[%s3] sm:$0xf]
    %v859 = vld [vmem:[%s3 + $0x4] sm:$0xf]
    %v860 = vld [vmem:[%s3 + $0x8] sm:$0xf]
    %v861 = vld [vmem:[%s3 + $0xc] sm:$0xf]
    %v862 = vld [vmem:[%s3 + $0x10] sm:$0xf]
    %v863 = vld [vmem:[%s3 + $0x14] sm:$0xf]
    %v864 = vld [vmem:[%s3 + $0x18] sm:$0xf]
    %v865 = vld [vmem:[%s3 + $0x1c] sm:$0xf]
    %v866 = vld [vmem:[%s3 + $0x20] sm:$0xf]
    %v867 = vld [vmem:[%s3 + $0x24] sm:$0xf]
    %v868 = vld [vmem:[%s3 + $0x28] sm:$0xf]
    %v869 = vld [vmem:[%s3 + $0x2c] sm:$0xf]
    %v870 = vld [vmem:[%s3 + $0x30] sm:$0xf]
    %v871 = vld [vmem:[%s3 + $0x34] sm:$0xf]
    %v872 = vld [vmem:[%s3 + $0x38] sm:$0xf]
    %v873 = vld [vmem:[%s3 + $0x3c] sm:$0xf]
    %v874 = vld [vmem:[%s3 + $0x40] sm:$0xf]
    %v875 = vld [vmem:[%s3 + $0x44] sm:$0xf]
    %v876 = vld [vmem:[%s3 + $0x48] sm:$0xf]
    %v877 = vld [vmem:[%s3 + $0x4c] sm:$0xf]
    %v878 = vld [vmem:[%s3 + $0x50] sm:$0xf]
    %v879 = vld [vmem:[%s3 + $0x54] sm:$0xf]
    %v880 = vld [vmem:[%s3 + $0x58] sm:$0xf]
    %v881 = vld [vmem:[%s3 + $0x5c] sm:$0xf]
    %v882 = vld [vmem:[%s3 + $0x60] sm:$0xf]
    %v883 = vld [vmem:[%s3 + $0x64] sm:$0xf]
    %v884 = vld [vmem:[%s3 + $0x68] sm:$0xf]
    %v885 = vld [vmem:[%s3 + $0x6c] sm:$0xf]
    %v886 = vld [vmem:[%s3 + $0x70] sm:$0xf]
    %v887 = vld [vmem:[%s3 + $0x74] sm:$0xf]
    %v888 = vld [vmem:[%s3 + $0x78] sm:$0xf]
    %v889 = vld [vmem:[%s3 + $0x7c] sm:$0xf]
    %v890 = vld [vmem:[%s4] sm:$0x1]
    %v892 = vperm.slane %v890, 0
    %v926 = vunpack.c.l.b16 %v858
    %v927 = vunpack.c.l.b16 %v859
    %v928 = vunpack.c.l.b16 %v860
    %v929 = vunpack.c.l.b16 %v861
    %v930 = vunpack.c.l.b16 %v862
    %v931 = vunpack.c.l.b16 %v863
    %v932 = vunpack.c.l.b16 %v864
    %v933 = vunpack.c.l.b16 %v865
    %v934 = vunpack.c.l.b16 %v866
    %v935 = vunpack.c.l.b16 %v867
    %v936 = vunpack.c.l.b16 %v868
    %v937 = vunpack.c.l.b16 %v869
    %v938 = vunpack.c.l.b16 %v870
    %v939 = vunpack.c.l.b16 %v871
    %v940 = vunpack.c.l.b16 %v872
    %v941 = vunpack.c.l.b16 %v873
    %v942 = vunpack.c.l.b16 %v874
    %v943 = vunpack.c.l.b16 %v875
    %v944 = vunpack.c.l.b16 %v876
    %v945 = vunpack.c.l.b16 %v877
    %v946 = vunpack.c.l.b16 %v878
    %v947 = vunpack.c.l.b16 %v879
    %v948 = vunpack.c.l.b16 %v880
    %v949 = vunpack.c.l.b16 %v881
    %v950 = vunpack.c.l.b16 %v882
    %v951 = vunpack.c.l.b16 %v883
    %v952 = vunpack.c.l.b16 %v884
    %v953 = vunpack.c.l.b16 %v885
    %v954 = vunpack.c.l.b16 %v886
    %v955 = vunpack.c.l.b16 %v887
    %v956 = vunpack.c.l.b16 %v888
    %v957 = vunpack.c.l.b16 %v889
    %v958 = vpack.c.b16 %v927, %v926
    %v959 = vpack.c.b16 %v929, %v928
    %v960 = vpack.c.b16 %v931, %v930
    %v961 = vpack.c.b16 %v933, %v932
    %v962 = vpack.c.b16 %v935, %v934
    %v963 = vpack.c.b16 %v937, %v936
    %v964 = vpack.c.b16 %v939, %v938
    %v965 = vpack.c.b16 %v941, %v940
    %v966 = vpack.c.b16 %v943, %v942
    %v967 = vpack.c.b16 %v945, %v944
    %v968 = vpack.c.b16 %v947, %v946
    %v969 = vpack.c.b16 %v949, %v948
    %v970 = vpack.c.b16 %v951, %v950
    %v971 = vpack.c.b16 %v953, %v952
    %v972 = vpack.c.b16 %v955, %v954
    %v973 = vpack.c.b16 %v957, %v956
    %990 = vmatpush.bf16.msra.mxu0 %v965
    %991 = vmatpush.bf16.msra.mxu0 %v964
    %992 = vmatpush.bf16.msra.mxu0 %v963
    %993 = vmatpush.bf16.msra.mxu0 %v962
    %994 = vmatpush.bf16.msra.mxu0 %v961
    %995 = vmatpush.bf16.msra.mxu0 %v960
    %996 = vmatpush.bf16.msra.mxu0 %v959
    %997 = vmatpush.bf16.msra.mxu0 %v958
    %998 = vmatmul.bf16.gmra.mxu0 %v856
    %v999 = vpop.f32.mrf.mxu0
    %v1000 = vadd.f32 %v892, %v999
    %v1001 = vpop.f32.mrf.mxu0
    %v1002 = vadd.f32 %v892, %v1001
    %1003 = vdwg.mxu0
    %1004 = vmatpush.bf16.msra.mxu0 %v973
    %1005 = vmatpush.bf16.msra.mxu0 %v972
    %1006 = vmatpush.bf16.msra.mxu0 %v971
    %1007 = vmatpush.bf16.msra.mxu0 %v970
    %1008 = vmatpush.bf16.msra.mxu0 %v969
    %1009 = vmatpush.bf16.msra.mxu0 %v968
    %1010 = vmatpush.bf16.msra.mxu0 %v967
    %1011 = vmatpush.bf16.msra.mxu0 %v966
    %1012 = vmatmul.bf16.gmra.mxu0 %v857
    %v1013 = vpop.f32.mrf.mxu0
    %v1014 = vadd.f32 %v1000, %v1013
    %v1015 = vpop.f32.mrf.mxu0
    %v1016 = vadd.f32 %v1002, %v1015
    %1017 = vdwg.mxu0
    %1018 = vst [vmem:[%s5] sm:$0xff] %v1014
    %1019 = vst [vmem:[%s5 + $0x8] sm:$0xff] %v1016
    // Predicated region
    $region26: #{mnist_nn_forward.1} parent=1 // pred_check
      _
    $region27: #{mnist_nn_forward.1} parent=1 // pred_check_branch
      %1021 = sbr.rel (0) target = $region29
    $region28: #{mnist_nn_forward.1} parent=1 // pred_region
      _
    $region29: #{mnist_nn_forward.1} parent=1 // pred_fallthru
      _
    // Predicated region
    $region30: #{mnist_nn_forward.1} parent=1 // pred_check
      _
    $region31: #{mnist_nn_forward.1} parent=1 // pred_check_branch
      %1023 = sbr.rel (0) target = $region33
    $region32: #{mnist_nn_forward.1} parent=1 // pred_region
      _
    $region33: #{mnist_nn_forward.1} parent=1 // pred_fallthru
      _
    %1024 = vsyncpa [#allocation3], 1

</llo_original>
